<compile_context>
chip_gen: v7x
topology: tpu7x:2x2x1
jax: 0.10.0
libtpu: 0.0.40
codegen_flags: <defaults>
</compile_context>

<pallas_src>
import functools

import jax
import jax.numpy as jnp
from jax.experimental import pallas as pl
from jax.experimental.pallas import tpu as pltpu


# ----------------------------- Pallas kernel -------------------------------

def _conv_bn_relu_kernel(p_ref, w_ref, g_ref, b_ref, o_ref, sum_ref, sq_ref,
                         *, if_bn, eps, m_total, ts):
    n = pl.program_id(0)          # batch index
    s = pl.program_id(1)          # spatial tile index

    if if_bn:
        @pl.when((n == 0) & (s == 0))
        def _init():
            sum_ref[...] = jnp.zeros_like(sum_ref)
            sq_ref[...] = jnp.zeros_like(sq_ref)

    # conv tile: (OC, K) @ (K, ts) -> (OC, ts); spatial sits on the dense lane
    # axis, channels on sublanes.  bf16 operands, f32 accumulation.
    y = jnp.dot(w_ref[...], p_ref[0], preferred_element_type=jnp.float32)

    if if_bn:
        # per-channel batch-stat accumulation (conv bias dropped: it cancels
        # exactly under the subsequent mean subtraction)
        sum_ref[...] += jnp.sum(y, axis=1, keepdims=True)
        sq_ref[...] += jnp.sum(y * y, axis=1, keepdims=True)

    col = s * ts
    if ts % 128 == 0:
        col = pl.multiple_of(col, 128)
    # output block is the full (N, OC, S) slab, VMEM-resident across the grid;
    # write this batch's spatial tile in place.
    o_ref[n, :, pl.ds(col, ts)] = y

    last = (n == pl.num_programs(0) - 1) & (s == pl.num_programs(1) - 1)

    @pl.when(last)
    def _finalize():
        if if_bn:
            mean = sum_ref[...] * (1.0 / m_total)                      # (OC, 1)
            var = jnp.maximum(sq_ref[...] * (1.0 / m_total) - mean * mean, 0.0)
            inv_std = jax.lax.rsqrt(var + eps)                         # EUP
            scale = g_ref[...] * inv_std
            shift = b_ref[...] - mean * scale
        else:
            scale = g_ref[...]            # ones
            shift = b_ref[...]            # conv bias (only applied without BN)
        o_ref[...] = jnp.maximum(
            o_ref[...] * scale[None, :, :] + shift[None, :, :], 0.0)


# ------------------------------- JAX glue ----------------------------------

def _interp_matrix(out_size, in_size):
    """Bilinear (align_corners=True) 1-D interpolation matrix (out_size, in_size)."""
    if in_size == 1:
        return jnp.ones((out_size, 1), jnp.float32)
    pos = jnp.arange(out_size, dtype=jnp.float32) * (in_size - 1) / (out_size - 1)
    lo = jnp.clip(jnp.floor(pos).astype(jnp.int32), 0, in_size - 2)
    frac = pos - lo.astype(jnp.float32)
    idx = jnp.arange(out_size)
    m = jnp.zeros((out_size, in_size), jnp.float32)
    m = m.at[idx, lo].add(1.0 - frac)
    m = m.at[idx, lo + 1].add(frac)
    return m


def _pick_spatial_tile(s, max_tile=2048):
    """Largest tile that is either all of s or a multiple-of-128 divisor of s."""
    best = s
    t = 128
    while t <= min(s, max_tile):
        if s % t == 0:
            best = t
        t += 128
    return best


def _conv_bn_relu_pallas(mag_x, conv_w, conv_b, gamma, beta, *, stride, padding,
                         if_bn=True, eps=1e-5, compute_dtype=jnp.bfloat16):
    N, C, H, W = mag_x.shape
    OC, _, KH, KW = conv_w.shape
    OH = (H + 2 * padding - KH) // stride + 1
    OW = (W + 2 * padding - KW) // stride + 1
    S = OH * OW
    K = C * KH * KW

    # im2col in JAX; layout (N, K, S) keeps channels/k on the sublane-ish axis
    # and spatial on the lane axis so the kernel output reshapes to NCHW with
    # no transpose.  Cast to bf16 first so the patch slab is half-size in HBM.
    xm = mag_x.astype(compute_dtype)
    xp = jnp.pad(xm, ((0, 0), (0, 0), (padding, padding), (padding, padding)))
    cols = []
    for kh in range(KH):
        for kw in range(KW):
            cols.append(xp[:, :,
                           kh:kh + (OH - 1) * stride + 1:stride,
                           kw:kw + (OW - 1) * stride + 1:stride])
    # (N, C, KH*KW, OH, OW) -> (N, C*KH*KW, OH*OW); (c, kh, kw) ordering matches
    # conv_w.reshape(OC, C*KH*KW)
    patches = jnp.stack(cols, axis=2).reshape(N, K, S)
    wmat = conv_w.reshape(OC, K).astype(compute_dtype)

    if if_bn:
        g = gamma.reshape(OC, 1).astype(jnp.float32)
        b = beta.reshape(OC, 1).astype(jnp.float32)
    else:
        g = jnp.ones((OC, 1), jnp.float32)
        b = conv_b.reshape(OC, 1).astype(jnp.float32)

    ts = _pick_spatial_tile(S)
    grid = (N, S // ts)

    itemsize = jnp.dtype(compute_dtype).itemsize
    vmem_need = (N * OC * S * 4                  # resident f32 output slab
                 + 2 * 2 * K * ts * itemsize     # double-buffered patch tiles
                 + 2 * OC * K * itemsize         # weights
                 + 6 * max(OC, 8) * 128 * 4)     # gamma/beta/stat scratch (padded)
    vmem_limit = int(min(64 * 1024 * 1024, max(16 * 1024 * 1024, 2 * vmem_need)))

    out = pl.pallas_call(
        functools.partial(_conv_bn_relu_kernel, if_bn=if_bn, eps=eps,
                          m_total=float(N * S), ts=ts),
        out_shape=jax.ShapeDtypeStruct((N, OC, S), jnp.float32),
        grid_spec=pltpu.PrefetchScalarGridSpec(
            num_scalar_prefetch=0,
            grid=grid,
            in_specs=[pl.BlockSpec((1, K, ts), lambda n, s: (n, 0, s)),
                      pl.BlockSpec((OC, K), lambda n, s: (0, 0)),
                      pl.BlockSpec((OC, 1), lambda n, s: (0, 0)),
                      pl.BlockSpec((OC, 1), lambda n, s: (0, 0))],
            out_specs=pl.BlockSpec((N, OC, S), lambda n, s: (0, 0, 0)),
            scratch_shapes=[pltpu.VMEM((OC, 1), jnp.float32),
                            pltpu.VMEM((OC, 1), jnp.float32)]),
        compiler_params=pltpu.CompilerParams(
            dimension_semantics=("arbitrary", "arbitrary"),
            vmem_limit_bytes=vmem_limit),
    )(patches, wmat, g, b)

    return out.reshape(N, OC, OH, OW)                     # NCHW, no transpose


def basic_magnify_cell_forward(x, params, *, mag_factor, pooling_size,
                               stride, padding, if_bn=True, eps=1e-5,
                               compute_dtype=jnp.bfloat16):
    N, C, H, W = x.shape
    p = pooling_size
    # MaxPool2d(kernel=p, stride=p)
    down = x.reshape(N, C, H // p, p, W // p, p).max(axis=(3, 5))
    # bilinear upsample back to (H, W), align_corners=True, via two interp matmuls
    Ah = _interp_matrix(H, H // p)
    Aw = _interp_matrix(W, W // p)
    coarse = jnp.einsum('hk,nckl,wl->nchw', Ah, down, Aw)
    # magnify: consumed directly by the im2col producer (XLA fuses it), instead
    # of a standalone Pallas kernel + HBM round trip.
    mag_x = x + (x - coarse) * mag_factor
    return _conv_bn_relu_pallas(mag_x, params['conv_w'], params['conv_b'],
                                params['gamma'], params['beta'],
                                stride=stride, padding=padding,
                                if_bn=if_bn, eps=eps,
                                compute_dtype=compute_dtype)


# ------------------------------ reference ----------------------------------

def _reference_forward(x, params, *, mag_factor, pooling_size, stride, padding,
                       eps=1e-5):
    N, C, H, W = x.shape
    p = pooling_size
    down = x.reshape(N, C, H // p, p, W // p, p).max(axis=(3, 5))
    Ah = _interp_matrix(H, H // p)
    Aw = _interp_matrix(W, W // p)
    coarse = jnp.einsum('hk,nckl,wl->nchw', Ah, down, Aw)
    mag_x = x + (x - coarse) * mag_factor
    y = jax.lax.conv_general_dilated(
        mag_x, params['conv_w'], (stride, stride),
        [(padding, padding), (padding, padding)],
        dimension_numbers=('NCHW', 'OIHW', 'NCHW'))
    y = y + params['conv_b'][None, :, None, None]
    mean = y.mean(axis=(0, 2, 3))
    var = y.var(axis=(0, 2, 3))
    yn = (y - mean[None, :, None, None]) / jnp.sqrt(var[None, :, None, None] + eps)
    yn = yn * params['gamma'][None, :, None, None] + params['beta'][None, :, None, None]
    return jnp.maximum(yn, 0.0)


# --------------------------------- main -------------------------------------

if __name__ == "__main__":
    key = jax.random.PRNGKey(0)
    k1, k2, k3, k4, k5 = jax.random.split(key, 5)

    N, C, H, W = 2, 4, 16, 16
    OC, KH, KW = 8, 3, 3
    stride, padding = 1, 1
    pooling_size = 2
    mag_factor = 2.0

    x = jax.random.normal(k1, (N, C, H, W), jnp.float32)
    fan_in = C * KH * KW
    params = dict(
        conv_w=jax.random.normal(k2, (OC, C, KH, KW), jnp.float32) / jnp.sqrt(fan_in),
        conv_b=0.1 * jax.random.normal(k3, (OC,), jnp.float32),
        gamma=1.0 + 0.1 * jax.random.normal(k4, (OC,), jnp.float32),
        beta=0.1 * jax.random.normal(k5, (OC,), jnp.float32),
    )

    fwd = jax.jit(functools.partial(
        basic_magnify_cell_forward, mag_factor=mag_factor,
        pooling_size=pooling_size, stride=stride, padding=padding, if_bn=True))
    out = jax.block_until_ready(fwd(x, params))

    ref = jax.block_until_ready(_reference_forward(
        x, params, mag_factor=mag_factor, pooling_size=pooling_size,
        stride=stride, padding=padding))

    assert out.shape == (N, OC, H, W), out.shape
    max_err = float(jnp.max(jnp.abs(out - ref)))
    # bf16 matmul operands vs an all-f32 reference
    assert jnp.allclose(out, ref, atol=3e-2, rtol=3e-2), f"max_err={max_err}"

    print("KERNEL_OK")
</pallas_src>

<mosaic_0001>
module attributes {stable_mosaic.version = 11 : i64} {
  func.func private @main(%arg0: i32) attributes {dimension_semantics = [#tpu.dimension_semantics<core_parallel>], iteration_bounds = array<i64: 2>, tpu.core_type = #tpu.core_type<sc_scalar_subcore>, window_params = []} {
    return
  }
}

module attributes {stable_mosaic.version = 11 : i64} {
  func.func private @main(%arg0: i32) attributes {dimension_semantics = [#tpu.dimension_semantics<core_parallel>], iteration_bounds = array<i64: 2>, tpu.core_type = #tpu.core_type<sc_scalar_subcore>, window_params = []} {
    return
  }
}

module attributes {stable_mosaic.version = 11 : i64} {
  func.func @_conv_bn_relu_kernel(%arg0: i32, %arg1: i32, %arg2: memref<1x36x256xbf16, #tpu.memory_space<vmem>>, %arg3: memref<8x36xbf16, #tpu.memory_space<vmem>>, %arg4: memref<8x1xf32, #tpu.memory_space<vmem>>, %arg5: memref<8x1xf32, #tpu.memory_space<vmem>>, %arg6: memref<2x8x256xf32, #tpu.memory_space<vmem>>, %arg7: memref<8x1xf32, #tpu.memory_space<vmem>>, %arg8: memref<8x1xf32, #tpu.memory_space<vmem>>) attributes {dimension_semantics = [#tpu.dimension_semantics<arbitrary>, #tpu.dimension_semantics<arbitrary>], iteration_bounds = array<i64: 2, 1>, scalar_prefetch = 0 : i64, scratch_operands = 2 : i64, tpu.core_type = #tpu.core_type<tc>, window_params = [{transform_indices = @transform_0, window_bounds = array<i64: 1, 36, 256>}, {pipeline_mode = #tpu.pipeline_mode<synchronous>, transform_indices = @transform_1, window_bounds = array<i64: 8, 36>}, {pipeline_mode = #tpu.pipeline_mode<synchronous>, transform_indices = @transform_2, window_bounds = array<i64: 8, 1>}, {pipeline_mode = #tpu.pipeline_mode<synchronous>, transform_indices = @transform_3, window_bounds = array<i64: 8, 1>}, {pipeline_mode = #tpu.pipeline_mode<synchronous>, transform_indices = @transform_4, window_bounds = array<i64: 2, 8, 256>}]} {
    %c0_i32 = arith.constant 0 : i32
    %0 = arith.cmpi eq, %arg0, %c0_i32 : i32
    %c0_i32_0 = arith.constant 0 : i32
    %1 = arith.cmpi eq, %arg1, %c0_i32_0 : i32
    %2 = arith.andi %0, %1 : i1
    %3 = arith.extui %2 : i1 to i32
    %c0_i32_1 = arith.constant 0 : i32
    %4 = arith.cmpi ne, %3, %c0_i32_1 : i32
    scf.if %4 {
      %cst_19 = arith.constant 0.000000e+00 : f32
      %32 = vector.broadcast %cst_19 : f32 to vector<8x1xf32>
      %c0_20 = arith.constant 0 : index
      %c0_21 = arith.constant 0 : index
      %33 = vector.load %arg7[%c0_20, %c0_21] : memref<8x1xf32, #tpu.memory_space<vmem>>, vector<8x1xf32>
      tpu.vector_store %arg7[%c0_20, %c0_21], %32 {strides = array<i32>} : memref<8x1xf32, #tpu.memory_space<vmem>>, vector<8x1xf32>,
      %cst_22 = arith.constant 0.000000e+00 : f32
      %34 = vector.broadcast %cst_22 : f32 to vector<8x1xf32>
      %c0_23 = arith.constant 0 : index
      %c0_24 = arith.constant 0 : index
      %35 = vector.load %arg8[%c0_23, %c0_24] : memref<8x1xf32, #tpu.memory_space<vmem>>, vector<8x1xf32>
      tpu.vector_store %arg8[%c0_23, %c0_24], %34 {strides = array<i32>} : memref<8x1xf32, #tpu.memory_space<vmem>>, vector<8x1xf32>,
    } else {
    }
    %c0 = arith.constant 0 : index
    %c0_2 = arith.constant 0 : index
    %5 = vector.load %arg3[%c0, %c0_2] : memref<8x36xbf16, #tpu.memory_space<vmem>>, vector<8x36xbf16>
    %c0_3 = arith.constant 0 : index
    %c0_4 = arith.constant 0 : index
    %c0_5 = arith.constant 0 : index
    %6 = vector.load %arg2[%c0_3, %c0_4, %c0_5] : memref<1x36x256xbf16, #tpu.memory_space<vmem>>, vector<1x36x256xbf16>
    %7 = vector.shape_cast %6 : vector<1x36x256xbf16> to vector<36x256xbf16>
    %cst = arith.constant dense<0.000000e+00> : vector<8x256xf32>
    %8 = tpu.matmul %5, %7, %cst {dimension_numbers = #tpu.dot_dimension_numbers<[1], [0], [0], [1], [0, 0, 1, 1], [], []>} : vector<8x36xbf16>, vector<36x256xbf16>, vector<8x256xf32> -> vector<8x256xf32>
    %c0_6 = arith.constant 0 : index
    %c0_7 = arith.constant 0 : index
    %9 = vector.load %arg7[%c0_6, %c0_7] : memref<8x1xf32, #tpu.memory_space<vmem>>, vector<8x1xf32>
    %cst_8 = arith.constant dense<0.000000e+00> : vector<8xf32>
    %10 = vector.multi_reduction <add>, %8, %cst_8 [1] : vector<8x256xf32> to vector<8xf32>
    %11 = vector.shape_cast %10 : vector<8xf32> to vector<8x1xf32>
    %12 = arith.addf %9, %11 : vector<8x1xf32>
    %c0_9 = arith.constant 0 : index
    %c0_10 = arith.constant 0 : index
    %13 = vector.load %arg7[%c0_9, %c0_10] : memref<8x1xf32, #tpu.memory_space<vmem>>, vector<8x1xf32>
    tpu.vector_store %arg7[%c0_9, %c0_10], %12 {strides = array<i32>} : memref<8x1xf32, #tpu.memory_space<vmem>>, vector<8x1xf32>,
    %c0_11 = arith.constant 0 : index
    %c0_12 = arith.constant 0 : index
    %14 = vector.load %arg8[%c0_11, %c0_12] : memref<8x1xf32, #tpu.memory_space<vmem>>, vector<8x1xf32>
    %15 = arith.mulf %8, %8 : vector<8x256xf32>
    %cst_13 = arith.constant dense<0.000000e+00> : vector<8xf32>
    %16 = vector.multi_reduction <add>, %15, %cst_13 [1] : vector<8x256xf32> to vector<8xf32>
    %17 = vector.shape_cast %16 : vector<8xf32> to vector<8x1xf32>
    %18 = arith.addf %14, %17 : vector<8x1xf32>
    %c0_14 = arith.constant 0 : index
    %c0_15 = arith.constant 0 : index
    %19 = vector.load %arg8[%c0_14, %c0_15] : memref<8x1xf32, #tpu.memory_space<vmem>>, vector<8x1xf32>
    tpu.vector_store %arg8[%c0_14, %c0_15], %18 {strides = array<i32>} : memref<8x1xf32, #tpu.memory_space<vmem>>, vector<8x1xf32>,
    %c256_i32 = arith.constant 256 : i32
    %20 = arith.muli %arg1, %c256_i32 : i32
    %21 = tpu.assume_multiple %20, 128 : i32
    %22 = arith.index_cast %arg0 : i32 to index
    %c0_16 = arith.constant 0 : index
    %23 = arith.index_cast %21 : i32 to index
    %24 = vector.load %arg6[%22, %c0_16, %23] : memref<2x8x256xf32, #tpu.memory_space<vmem>>, vector<1x8x256xf32>
    %25 = vector.shape_cast %24 : vector<1x8x256xf32> to vector<8x256xf32>
    %26 = vector.shape_cast %8 : vector<8x256xf32> to vector<1x8x256xf32>
    tpu.vector_store %arg6[%22, %c0_16, %23], %26 {strides = array<i32>} : memref<2x8x256xf32, #tpu.memory_space<vmem>>, vector<1x8x256xf32>,
    %c1_i32 = arith.constant 1 : i32
    %27 = arith.cmpi eq, %arg0, %c1_i32 : i32
    %c0_i32_17 = arith.constant 0 : i32
    %28 = arith.cmpi eq, %arg1, %c0_i32_17 : i32
    %29 = arith.andi %27, %28 : i1
    %30 = arith.extui %29 : i1 to i32
    %c0_i32_18 = arith.constant 0 : i32
    %31 = arith.cmpi ne, %30, %c0_i32_18 : i32
    scf.if %31 {
      %c0_19 = arith.constant 0 : index
      %c0_20 = arith.constant 0 : index
      %32 = vector.load %arg7[%c0_19, %c0_20] : memref<8x1xf32, #tpu.memory_space<vmem>>, vector<8x1xf32>
      %cst_21 = arith.constant 0.001953125 : f32
      %33 = vector.broadcast %cst_21 : f32 to vector<8x1xf32>
      %34 = arith.mulf %32, %33 : vector<8x1xf32>
      %c0_22 = arith.constant 0 : index
      %c0_23 = arith.constant 0 : index
      %35 = vector.load %arg8[%c0_22, %c0_23] : memref<8x1xf32, #tpu.memory_space<vmem>>, vector<8x1xf32>
      %cst_24 = arith.constant 0.001953125 : f32
      %36 = vector.broadcast %cst_24 : f32 to vector<8x1xf32>
      %37 = arith.mulf %35, %36 : vector<8x1xf32>
      %38 = arith.mulf %34, %34 : vector<8x1xf32>
      %39 = arith.subf %37, %38 : vector<8x1xf32>
      %cst_25 = arith.constant 0.000000e+00 : f32
      %40 = vector.broadcast %cst_25 : f32 to vector<8x1xf32>
      %41 = arith.maximumf %39, %40 : vector<8x1xf32>
      %cst_26 = arith.constant 9.99999974E-6 : f32
      %42 = vector.broadcast %cst_26 : f32 to vector<8x1xf32>
      %43 = arith.addf %41, %42 : vector<8x1xf32>
      %44 = math.rsqrt %43 : vector<8x1xf32>
      %c0_27 = arith.constant 0 : index
      %c0_28 = arith.constant 0 : index
      %45 = vector.load %arg4[%c0_27, %c0_28] : memref<8x1xf32, #tpu.memory_space<vmem>>, vector<8x1xf32>
      %46 = arith.mulf %45, %44 : vector<8x1xf32>
      %c0_29 = arith.constant 0 : index
      %c0_30 = arith.constant 0 : index
      %47 = vector.load %arg5[%c0_29, %c0_30] : memref<8x1xf32, #tpu.memory_space<vmem>>, vector<8x1xf32>
      %48 = arith.mulf %34, %46 : vector<8x1xf32>
      %49 = arith.subf %47, %48 : vector<8x1xf32>
      %c0_31 = arith.constant 0 : index
      %c0_32 = arith.constant 0 : index
      %c0_33 = arith.constant 0 : index
      %50 = vector.load %arg6[%c0_31, %c0_32, %c0_33] : memref<2x8x256xf32, #tpu.memory_space<vmem>>, vector<2x8x256xf32>
      %51 = vector.shape_cast %46 : vector<8x1xf32> to vector<1x8x1xf32>
      %52 = vector.broadcast %51 : vector<1x8x1xf32> to vector<2x8x256xf32>
      %53 = arith.mulf %50, %52 : vector<2x8x256xf32>
      %54 = vector.shape_cast %49 : vector<8x1xf32> to vector<1x8x1xf32>
      %55 = vector.broadcast %54 : vector<1x8x1xf32> to vector<2x8x256xf32>
      %56 = arith.addf %53, %55 : vector<2x8x256xf32>
      %cst_34 = arith.constant 0.000000e+00 : f32
      %57 = vector.broadcast %cst_34 : f32 to vector<2x8x256xf32>
      %58 = arith.maximumf %56, %57 : vector<2x8x256xf32>
      %c0_35 = arith.constant 0 : index
      %c0_36 = arith.constant 0 : index
      %c0_37 = arith.constant 0 : index
      %59 = vector.load %arg6[%c0_35, %c0_36, %c0_37] : memref<2x8x256xf32, #tpu.memory_space<vmem>>, vector<2x8x256xf32>
      tpu.vector_store %arg6[%c0_35, %c0_36, %c0_37], %58 {strides = array<i32>} : memref<2x8x256xf32, #tpu.memory_space<vmem>>, vector<2x8x256xf32>,
    } else {
    }
    return
  }
  func.func @transform_0(%arg0: i32, %arg1: i32) -> (i32, i32, i32) {
    %c0_i32 = arith.constant 0 : i32
    %c0_i32_0 = arith.constant 0 : i32
    return %arg0, %c0_i32, %arg1 : i32, i32, i32
  }
  func.func @transform_1(%arg0: i32, %arg1: i32) -> (i32, i32) {
    %c0_i32 = arith.constant 0 : i32
    %c0_i32_0 = arith.constant 0 : i32
    %c0_i32_1 = arith.constant 0 : i32
    return %c0_i32, %c0_i32_0 : i32, i32
  }
  func.func @transform_2(%arg0: i32, %arg1: i32) -> (i32, i32) {
    %c0_i32 = arith.constant 0 : i32
    %c0_i32_0 = arith.constant 0 : i32
    %c0_i32_1 = arith.constant 0 : i32
    return %c0_i32, %c0_i32_0 : i32, i32
  }
  func.func @transform_3(%arg0: i32, %arg1: i32) -> (i32, i32) {
    %c0_i32 = arith.constant 0 : i32
    %c0_i32_0 = arith.constant 0 : i32
    %c0_i32_1 = arith.constant 0 : i32
    return %c0_i32, %c0_i32_0 : i32, i32
  }
  func.func @transform_4(%arg0: i32, %arg1: i32) -> (i32, i32, i32) {
    %c0_i32 = arith.constant 0 : i32
    %c0_i32_0 = arith.constant 0 : i32
    %c0_i32_1 = arith.constant 0 : i32
    %c0_i32_2 = arith.constant 0 : i32
    return %c0_i32, %c0_i32_0, %c0_i32_1 : i32, i32, i32
  }
}

</mosaic_0001>

<llo_original>
// kernel: basic_magnify_cell_forward.1
$region0: #{basic_magnify_cell_forward.1}
  #allocation0 [shape = 'u32[]', space=smem, size = 0x4, offset = 0x4, fixed_abs, tag = 'smem constant byte address 0x4 - core index']
  #allocation1 [shape = 'u32[144,128]{1,0:T(1,128)}', space=vmem, size = 0x12000, scoped, tag = 'internal scratch']
  #allocation2 [shape = 'f32[8,1]{1,0:T(8,128)}', space=vmem, size = 0x1000, scoped, tag = 'scratch operand']
  #allocation3 [shape = 'f32[8,1]{1,0:T(8,128)}', space=vmem, size = 0x1000, scoped, tag = 'scratch operand']
  %s0 = inlined_call_operand.vmem [shape: bf16[2,36,256], index: 0, kind: input, shape index: {}]
  %s1 = inlined_call_operand.vmem [shape: bf16[8,36], index: 1, kind: input, shape index: {}]
  %s2 = inlined_call_operand.vmem [shape: f32[8,1], index: 2, kind: input, shape index: {}]
  %s3 = inlined_call_operand.vmem [shape: f32[8,1], index: 3, kind: input, shape index: {}]
  %s4 = inlined_call_operand.vmem [shape: f32[2,8,256], index: 4, kind: output, shape index: {}]
  %s5 = sld [smem:[#allocation0]]
  $region57: #{basic_magnify_cell_forward.1} parent=0
    _
  %s7 = ssub.s32 1, %s5
  %s8 = scalar_select 0, %s7, %s5
  loop: start=0, step=1, limit=4
  $region2: #{basic_magnify_cell_forward.1} parent=0 // loop_pre_header
    _
  $region3: #{basic_magnify_cell_forward.1} parent=0 // loop_header
    %s10 = sphi 0, %s14
    %p11 = scmp.ge.s32.totalorder %s10, 4
    %s17 = sphi 0, %s29
    %s18 = sphi 0, %s25
    %s19 = sphi 0, %s17
    %s20 = sphi 0, %s18
    %s21 = sphi 0, %s19
    %s22 = sphi 0, %s20
    %s34 = sphi 0, %s36
    %s37 = sphi 0, %s34
    %s38 = sphi 0, %s37
    %s54 = sphi 0, %s38
    %s58 = sphi 0, %s58
    %s60 = sphi 0, %s58
    %s61 = sphi 0, %s60
    %s75 = sphi 0, %s61
    %s79 = sphi 0, %s79
    %s81 = sphi 0, %s79
    %s82 = sphi 0, %s81
    %s96 = sphi 0, %s82
    %s100 = sphi 0, %s100
    %s102 = sphi 0, %s100
    %s103 = sphi 0, %s102
    %s117 = sphi 0, %s103
    %s121 = sphi 0, %s121
    %s123 = sphi 0, %s121
    %s124 = sphi 0, %s123
    %s138 = sphi 0, %s124
  $region4: #{basic_magnify_cell_forward.1} parent=0 // loop_header_branch
    %13 = sbr.rel (%p11) target = $region8
  $region5: #{basic_magnify_cell_forward.1} parent=0 // loop_body
    %s15 = ssub.s32 %s10, 1
    %s16 = ssub.s32 %s10, 2
    %s23 = sadd.s32 1, %s18
    %p24 = scmp.ge.s32.totalorder %s23, 1
    %s25 = scalar_select %p24, 0, %s23
    %s26 = sadd.s32 1, %s17
    %s27 = scalar_select %p24, %s26, %s17
    %p28 = scmp.ge.s32.totalorder %s27, 2
    %s29 = scalar_select %p28, 0, %s27
    %s30 = ssub.s32 %s17, %s29
    %s31 = ssub.s32 %s18, %s25
    %s32 = sor.u32 %s30, %s31
    %p33 = scmp.eq.s32.totalorder %s32, 0
    %s35 = sadd.s32 %s34, 1
    %s36 = scalar_select %p33, %s34, %s35
    %p39 = pneg %p33
    %p40 = scmp.eq.s32.totalorder %s10, 1
    %p41 = por %p39, %p40
    %p42 = scmp.ne.s32.totalorder %s34, %s37
    %p43 = scmp.eq.s32.totalorder %s10, 0
    %p44 = por %p42, %p43
    %p45 = scmp.ne.s32.totalorder %s34, %s37
    %p46 = scmp.eq.s32.totalorder %s15, 1
    %p47 = por %p45, %p46
    %p48 = scmp.ne.s32.totalorder %s37, %s38
    %p49 = scmp.eq.s32.totalorder %s15, 0
    %p50 = por %p48, %p49
    %p51 = scmp.ne.s32.totalorder %s37, %s38
    %p52 = scmp.eq.s32.totalorder %s16, 1
    %p53 = por %p51, %p52
    %p55 = scmp.ne.s32.totalorder %s38, %s54
    %p56 = scmp.eq.s32.totalorder %s16, 0
    %p57 = por %p55, %p56
    %s59 = sadd.s32 %s58, 1
    %p62 = scmp.eq.s32.totalorder %s10, 1
    %p63 = scmp.ne.s32.totalorder %s58, %s60
    %p64 = scmp.eq.s32.totalorder %s10, 0
    %p65 = por %p63, %p64
    %p66 = scmp.ne.s32.totalorder %s58, %s60
    %p67 = scmp.eq.s32.totalorder %s15, 1
    %p68 = por %p66, %p67
    %p69 = scmp.ne.s32.totalorder %s60, %s61
    %p70 = scmp.eq.s32.totalorder %s15, 0
    %p71 = por %p69, %p70
    %p72 = scmp.ne.s32.totalorder %s60, %s61
    %p73 = scmp.eq.s32.totalorder %s16, 1
    %p74 = por %p72, %p73
    %p76 = scmp.ne.s32.totalorder %s61, %s75
    %p77 = scmp.eq.s32.totalorder %s16, 0
    %p78 = por %p76, %p77
    %s80 = sadd.s32 %s79, 1
    %p83 = scmp.eq.s32.totalorder %s10, 1
    %p84 = scmp.ne.s32.totalorder %s79, %s81
    %p85 = scmp.eq.s32.totalorder %s10, 0
    %p86 = por %p84, %p85
    %p87 = scmp.ne.s32.totalorder %s79, %s81
    %p88 = scmp.eq.s32.totalorder %s15, 1
    %p89 = por %p87, %p88
    %p90 = scmp.ne.s32.totalorder %s81, %s82
    %p91 = scmp.eq.s32.totalorder %s15, 0
    %p92 = por %p90, %p91
    %p93 = scmp.ne.s32.totalorder %s81, %s82
    %p94 = scmp.eq.s32.totalorder %s16, 1
    %p95 = por %p93, %p94
    %p97 = scmp.ne.s32.totalorder %s82, %s96
    %p98 = scmp.eq.s32.totalorder %s16, 0
    %p99 = por %p97, %p98
    %s101 = sadd.s32 %s100, 1
    %p104 = scmp.eq.s32.totalorder %s10, 1
    %p105 = scmp.ne.s32.totalorder %s100, %s102
    %p106 = scmp.eq.s32.totalorder %s10, 0
    %p107 = por %p105, %p106
    %p108 = scmp.ne.s32.totalorder %s100, %s102
    %p109 = scmp.eq.s32.totalorder %s15, 1
    %p110 = por %p108, %p109
    %p111 = scmp.ne.s32.totalorder %s102, %s103
    %p112 = scmp.eq.s32.totalorder %s15, 0
    %p113 = por %p111, %p112
    %p114 = scmp.ne.s32.totalorder %s102, %s103
    %p115 = scmp.eq.s32.totalorder %s16, 1
    %p116 = por %p114, %p115
    %p118 = scmp.ne.s32.totalorder %s103, %s117
    %p119 = scmp.eq.s32.totalorder %s16, 0
    %p120 = por %p118, %p119
    %s122 = sadd.s32 %s121, 1
    %p125 = scmp.eq.s32.totalorder %s10, 1
    %p126 = scmp.ne.s32.totalorder %s121, %s123
    %p127 = scmp.eq.s32.totalorder %s10, 0
    %p128 = por %p126, %p127
    %p129 = scmp.ne.s32.totalorder %s121, %s123
    %p130 = scmp.eq.s32.totalorder %s15, 1
    %p131 = por %p129, %p130
    %p132 = scmp.ne.s32.totalorder %s123, %s124
    %p133 = scmp.eq.s32.totalorder %s15, 0
    %p134 = por %p132, %p133
    %p135 = scmp.ne.s32.totalorder %s123, %s124
    %p136 = scmp.eq.s32.totalorder %s16, 1
    %p137 = por %p135, %p136
    %p139 = scmp.ne.s32.totalorder %s124, %s138
    %p140 = scmp.eq.s32.totalorder %s16, 0
    %p141 = por %p139, %p140
    %p142 = scmp.le.s32.totalorder 1, %s10
    %p143 = scmp.lt.s32.totalorder %s10, 3
    %p144 = pnand %p142, %p143
    %p145 = pneg %p144
    // Predicated region
    $region9: #{basic_magnify_cell_forward.1} parent=5 // pred_check
      _
    $region10: #{basic_magnify_cell_forward.1} parent=5 // pred_check_branch
      %147 = sbr.rel (%p144) target = $region12
    $region11: #{basic_magnify_cell_forward.1} parent=5 // pred_region
      %s148 = ssub.s32 %s10, 1
      // Predicated region
      $region13: #{basic_magnify_cell_forward.1} parent=11 // pred_check
        %p149 = pneg %p71
      $region14: #{basic_magnify_cell_forward.1} parent=11 // pred_check_branch
        %151 = sbr.rel (%p149) target = $region16
      $region15: #{basic_magnify_cell_forward.1} parent=11 // pred_region
        _
      $region16: #{basic_magnify_cell_forward.1} parent=11 // pred_fallthru
        _
      // Predicated region
      $region17: #{basic_magnify_cell_forward.1} parent=11 // pred_check
        %p152 = pneg %p92
      $region18: #{basic_magnify_cell_forward.1} parent=11 // pred_check_branch
        %154 = sbr.rel (%p152) target = $region20
      $region19: #{basic_magnify_cell_forward.1} parent=11 // pred_region
        _
      $region20: #{basic_magnify_cell_forward.1} parent=11 // pred_fallthru
        _
      // Predicated region
      $region21: #{basic_magnify_cell_forward.1} parent=11 // pred_check
        %p155 = pneg %p113
      $region22: #{basic_magnify_cell_forward.1} parent=11 // pred_check_branch
        %157 = sbr.rel (%p155) target = $region24
      $region23: #{basic_magnify_cell_forward.1} parent=11 // pred_region
        _
      $region24: #{basic_magnify_cell_forward.1} parent=11 // pred_fallthru
        _
    $region12: #{basic_magnify_cell_forward.1} parent=5 // pred_fallthru
      _
    %p158 = scmp.lt.s32.totalorder %s10, 2
    // Predicated region
    $region25: #{basic_magnify_cell_forward.1} parent=5 // pred_check
      %p159 = pneg %p158
    $region26: #{basic_magnify_cell_forward.1} parent=5 // pred_check_branch
      %161 = sbr.rel (%p159) target = $region28
    $region27: #{basic_magnify_cell_forward.1} parent=5 // pred_region
      // Predicated region
      $region29: #{basic_magnify_cell_forward.1} parent=27 // pred_check
        %p162 = pneg %p44
      $region30: #{basic_magnify_cell_forward.1} parent=27 // pred_check_branch
        %164 = sbr.rel (%p162) target = $region32
      $region31: #{basic_magnify_cell_forward.1} parent=27 // pred_region
        %s165 = smul.u32 2, %s18
        %p166 = scmp.lt.s32.totalorder %s17, 1
        %s167 = scalar_select %p166, %s17, 1
        %p168 = scmp.lt.s32.totalorder %s165, 1
        %s169 = scalar_select %p168, %s165, 1
        %s170 = smul.addr %s167, 10
        %s171 = sadd.s32 %s169, %s170
        %s172 = smul.addr %s171, 4
        %s173 = scalar_lea.vmem %s0, %s172
        %s174 = smul.u32 2, %s18
      $region32: #{basic_magnify_cell_forward.1} parent=27 // pred_fallthru
        _
    $region28: #{basic_magnify_cell_forward.1} parent=5 // pred_fallthru
      _
    %p175 = scmp.le.s32.totalorder 1, %s10
    %p176 = scmp.lt.s32.totalorder %s10, 3
    %p177 = pnand %p175, %p176
    %p178 = pneg %p177
    // Predicated region
    $region33: #{basic_magnify_cell_forward.1} parent=5 // pred_check
      _
    $region34: #{basic_magnify_cell_forward.1} parent=5 // pred_check_branch
      %180 = sbr.rel (%p177) target = $region36
    $region35: #{basic_magnify_cell_forward.1} parent=5 // pred_region
      %s181 = ssub.s32 %s10, 1
      %s182 = smul.u32 2, %s20
      %p183 = scmp.lt.s32.totalorder %s19, 1
      %s184 = scalar_select %p183, %s19, 1
      %p185 = scmp.lt.s32.totalorder %s182, 1
      %s186 = scalar_select %p185, %s182, 1
      %s187 = smul.addr %s184, 10
      %s188 = sadd.s32 %s186, %s187
      %s189 = smul.addr %s188, 4
      %s190 = scalar_lea.vmem %s0, %s189
      %p191 = pneg %p50
      %p192 = pneg %p47
      %p193 = pneg %p71
      %p194 = pneg %p68
      %p195 = pneg %p92
      %p196 = pneg %p89
      %p197 = pneg %p113
      %p198 = pneg %p110
      %p199 = pneg %p134
      %p200 = pneg %p131
      %s201 = smul.u32 2, %s20
      %p202 = scmp.lt.s32.totalorder %s19, 1
      %s203 = scalar_select %p202, %s19, 1
      %p204 = scmp.lt.s32.totalorder %s201, 1
      %s205 = scalar_select %p204, %s201, 1
      %s206 = smul.addr %s203, 10
      %s207 = sadd.s32 %s205, %s206
      %s208 = smul.addr %s207, 4
      %s209 = scalar_lea.vmem %s0, %s208
      %s210 = smul.u32 2, %s20
      %p212 = scmp.eq.s32.totalorder %s19, 0
      %p213 = scmp.eq.s32.totalorder %s20, 0
      %p214 = pnand %p212, %p213
      %p215 = pneg %p214
      // Predicated region
      $region37: #{basic_magnify_cell_forward.1} parent=35 // pred_check
        _
      $region38: #{basic_magnify_cell_forward.1} parent=35 // pred_check_branch
        %217 = sbr.rel (%p214) target = $region40
      $region39: #{basic_magnify_cell_forward.1} parent=35 // pred_region
        %vm218 = vcmask 7168
        %219 = vst.msk [vmem:[#allocation2] sm:$0xff] %vm218, 0.0
        %220 = vst.msk [vmem:[#allocation3] sm:$0xff] %vm218, 0.0
      $region40: #{basic_magnify_cell_forward.1} parent=35 // pred_fallthru
        _
      %v221 = vld [vmem:[%s1] sm:$0xf]
      %v222 = vld [vmem:[%s209] sm:$0xff]
      %v223 = vld [vmem:[%s209 + $0x8] sm:$0xff]
      %v224 = vld [vmem:[%s209 + $0x10] sm:$0xff]
      %v225 = vld [vmem:[%s209 + $0x18] sm:$0xff]
      %v226 = vld [vmem:[%s209 + $0x20] sm:$0x33]
      %v232 = vunpack.c.l.b16 %v222
      %v233 = vunpack.c.h.b16 %v222
      %v234 = vunpack.c.l.b16 %v223
      %v235 = vunpack.c.h.b16 %v223
      %v236 = vunpack.c.l.b16 %v224
      %v237 = vunpack.c.h.b16 %v224
      %v238 = vunpack.c.l.b16 %v225
      %v239 = vunpack.c.h.b16 %v225
      %v240 = vunpack.c.l.b16 %v226
      %v241 = vunpack.c.h.b16 %v226
      %v242 = vpack.c.b16 %v234, %v232
      %v243 = vpack.c.b16 %v235, %v233
      %v244 = vpack.c.b16 %v238, %v236
      %v245 = vpack.c.b16 %v239, %v237
      %v246 = vpack.c.b16 %v240, %v240
      %v247 = vpack.c.b16 %v241, %v241
      %vm252 = vcmask 293888
      %v254 = vsel %vm252, %v221, 0
      %vm256 = vcmask 1041408
      %v258 = vsel %vm256, %v246, 0
      %v261 = vsel %vm256, %v247, 0
      %263 = vmatprep.subr.bf16.mxu0 %v243
      %264 = vmatpush1.bf16.msra.mxu0 %v242
      %265 = vmatprep.subr.bf16.mxu0 %v245
      %266 = vmatpush1.bf16.msra.mxu0 %v244
      %267 = vmatprep.subr.bf16.mxu0 %v261
      %268 = vmatpush1.bf16.msra.mxu0 %v258
      %269 = vmatprep.subr.bf16.mxu0 0
      %270 = vmatpush1.bf16.msra.mxu0 0
      %271 = vmatprep.subr.bf16.mxu0 0
      %272 = vmatpush1.bf16.msra.mxu0 0
      %273 = vmatprep.subr.bf16.mxu0 0
      %274 = vmatpush1.bf16.msra.mxu0 0
      %275 = vmatprep.subr.bf16.mxu0 0
      %276 = vmatpush1.bf16.msra.mxu0 0
      %277 = vmatprep.subr.bf16.mxu0 0
      %278 = vmatpush1.bf16.msra.mxu0 0
      %279 = vmatprep.subr.bf16.mxu0 0
      %280 = vmatpush1.bf16.msra.mxu0 0
      %281 = vmatprep.subr.bf16.mxu0 0
      %282 = vmatpush1.bf16.msra.mxu0 0
      %283 = vmatprep.subr.bf16.mxu0 0
      %284 = vmatpush1.bf16.msra.mxu0 0
      %285 = vmatprep.subr.bf16.mxu0 0
      %286 = vmatpush1.bf16.msra.mxu0 0
      %287 = vmatprep.subr.bf16.mxu0 0
      %288 = vmatpush1.bf16.msra.mxu0 0
      %289 = vmatprep.subr.bf16.mxu0 0
      %290 = vmatpush1.bf16.msra.mxu0 0
      %291 = vmatprep.subr.bf16.mxu0 0
      %292 = vmatpush1.bf16.msra.mxu0 0
      %293 = vmatprep.subr.bf16.mxu0 0
      %294 = vmatpush1.bf16.msra.mxu0 0
      %295 = vmatprep.mubr.bf16.mxu0 0
      %296 = vmatmul.mubr.bf16.gmra.mrb[0].mxu0 %v254
      %v297 = vpop.f32.mrb[0].mxu0
      %v298 = vadd.f32 0.0, %v297
      %v299 = vpop.f32.mrb[0].mxu0
      %v300 = vadd.f32 0.0, %v299
      %v301 = vpop.f32.mrb[0].mxu0
      %v302 = vpop.f32.mrb[0].mxu0
      %303 = vdwg.mxu0
      %v304 = vld [vmem:[#allocation2] sm:$0xff]
      %v305 = vadd.f32 %v298, %v300
      %306 = vadd.xlane.f32.xlu0 %v305
      %v307 = vpop.xlane.xlu0 %306
      %v308 = vadd.f32 %v304, %v307
      %vm309 = vcmask 7168
      %310 = vst.msk [vmem:[#allocation2] sm:$0xff] %vm309, %v308
      %v311 = vld [vmem:[#allocation3] sm:$0xff]
      %v312 = vmul.f32 %v298, %v298
      %v313 = vmul.f32 %v300, %v300
      %v314 = vadd.f32 %v312, %v313
      %315 = vadd.xlane.f32.xlu0 %v314
      %v316 = vpop.xlane.xlu0 %315
      %v317 = vadd.f32 %v311, %v316
      %318 = vst.msk [vmem:[#allocation3] sm:$0xff] %vm309, %v317
      %s319 = smul.u32 %s20, 256
      %s320 = sshra.s32 %s319, 7
      %s321 = sand.u32 %s319, 127
      %s322 = smul.u32 %s19, 2
      %s323 = sadd.s32 %s320, %s322
      %s324 = smul.addr %s323, 8
      %s325 = scalar_lea.vmem %s4, %s324
      %326 = vst [vmem:[%s325] sm:$0xff] %v298
      %327 = vst [vmem:[%s325 + $0x8] sm:$0xff] %v300
      %p328 = scmp.eq.s32.totalorder %s19, 1
      %p329 = pnand %p328, %p213
      %p330 = pneg %p329
      // Predicated region
      $region41: #{basic_magnify_cell_forward.1} parent=35 // pred_check
        _
      $region42: #{basic_magnify_cell_forward.1} parent=35 // pred_check_branch
        %332 = sbr.rel (%p329) target = $region44
      $region43: #{basic_magnify_cell_forward.1} parent=35 // pred_region
        %v333 = vld [vmem:[#allocation2] sm:$0xff]
        %v334 = vmul.f32 %v333, 0.001953125
        %v335 = vld [vmem:[#allocation3] sm:$0xff]
        %v336 = vmul.f32 %v335, 0.001953125
        %v337 = vmul.f32 %v334, %v334
        %v338 = vsub.f32 %v336, %v337
        %v339 = vmax.f32 %v338, 0.0
        %v340 = vadd.f32 %v339, 1e-05
        %v341 = vrsqrt.pop %v340
        %v342 = vld [vmem:[%s2] sm:$0xff]
        %v343 = vmul.f32 %v342, %v341
        %v344 = vld [vmem:[%s3] sm:$0xff]
        %v345 = vmul.f32 %v334, %v343
        %v346 = vsub.f32 %v344, %v345
        %v347 = vld [vmem:[%s4] sm:$0xff]
        %v348 = vld [vmem:[%s4 + $0x8] sm:$0xff]
        %v349 = vld [vmem:[%s4 + $0x10] sm:$0xff]
        %v350 = vld [vmem:[%s4 + $0x18] sm:$0xff]
        %352 = vset.pattern.permute.xlu0 0
        %353 = vperm.xlu0 %352, %v343
        %v354 = vpop.permute.xlu0 %353
        %v356 = vmul.f32 %v347, %v354
        %v357 = vmul.f32 %v348, %v354
        %v358 = vmul.f32 %v349, %v354
        %v359 = vmul.f32 %v350, %v354
        %361 = vset.pattern.permute.xlu0 0
        %362 = vperm.xlu0 %361, %v346
        %v363 = vpop.permute.xlu0 %362
        %v365 = vadd.f32 %v356, %v363
        %v366 = vadd.f32 %v357, %v363
        %v367 = vadd.f32 %v358, %v363
        %v368 = vadd.f32 %v359, %v363
        %v369 = vmax.f32 %v365, 0.0
        %v370 = vmax.f32 %v366, 0.0
        %v371 = vmax.f32 %v367, 0.0
        %v372 = vmax.f32 %v368, 0.0
        %373 = vst [vmem:[%s4] sm:$0xff] %v369
        %374 = vst [vmem:[%s4 + $0x8] sm:$0xff] %v370
        %375 = vst [vmem:[%s4 + $0x10] sm:$0xff] %v371
        %376 = vst [vmem:[%s4 + $0x18] sm:$0xff] %v372
      $region44: #{basic_magnify_cell_forward.1} parent=35 // pred_fallthru
        _
      // Predicated region
      $region45: #{basic_magnify_cell_forward.1} parent=35 // pred_check
        %p377 = pneg %p131
      $region46: #{basic_magnify_cell_forward.1} parent=35 // pred_check_branch
        %379 = sbr.rel (%p377) target = $region48
      $region47: #{basic_magnify_cell_forward.1} parent=35 // pred_region
        _
      $region48: #{basic_magnify_cell_forward.1} parent=35 // pred_fallthru
        _
      // Predicated region
      $region49: #{basic_magnify_cell_forward.1} parent=35 // pred_check
        %p380 = pneg %p131
      $region50: #{basic_magnify_cell_forward.1} parent=35 // pred_check_branch
        %382 = sbr.rel (%p380) target = $region52
      $region51: #{basic_magnify_cell_forward.1} parent=35 // pred_region
        _
      $region52: #{basic_magnify_cell_forward.1} parent=35 // pred_fallthru
        _
    $region36: #{basic_magnify_cell_forward.1} parent=5 // pred_fallthru
      _
    %p383 = scmp.le.s32.totalorder 2, %s10
    // Predicated region
    $region53: #{basic_magnify_cell_forward.1} parent=5 // pred_check
      %p384 = pneg %p383
    $region54: #{basic_magnify_cell_forward.1} parent=5 // pred_check_branch
      %386 = sbr.rel (%p384) target = $region56
    $region55: #{basic_magnify_cell_forward.1} parent=5 // pred_region
      %s387 = ssub.s32 %s10, 2
    $region56: #{basic_magnify_cell_forward.1} parent=5 // pred_fallthru
      _
  $region6: #{basic_magnify_cell_forward.1} parent=0 // loop_footer
    %s14 = sadd.s32 1, %s10
  $region7: #{basic_magnify_cell_forward.1} parent=0 // loop_footer_branch
    %9 = sbr.rel target = $region3
  $region8: #{basic_magnify_cell_forward.1} parent=0 // loop_exit
    _

</llo_original>
